<compile_context>
chip_gen: v7x
topology: tpu7x:2x2x1
jax: 0.10.0
libtpu: 0.0.40
codegen_flags: <defaults>
</compile_context>

<pallas_src>
import functools
import math

import jax
import jax.numpy as jnp
from jax import lax
from jax.experimental import pallas as pl
from jax.experimental.pallas import tpu as pltpu

KL_TEMPERATURE = 2.0          # args.kl_temperature (deterministic, set in-script)
_MAX_TILE_ROWS = 2048         # ~512 KiB of bf16 per input block at N=128
_MAX_TILE_ELEMS = 2048 * 128  # cap rows*cols so wide-N inputs stay in budget
_LN2 = math.log(2.0)


def _round_up(x, m):
    return -(-x // m) * m


def _choose_layout(batch, n, max_tile_rows):
    """Pick (n_splits, tile_rows, tiles_per_split, padded_batch)."""
    # Two "parallel" splits so both v7x TensorCores get work (harmless extra
    # sequential grid step on single-TC v5e/v6e).
    n_splits = 2 if batch >= 16 else 1
    cap = min(max_tile_rows, max(8, _MAX_TILE_ELEMS // max(n, 1)))
    cap = max(8, (cap // 8) * 8)                       # keep sublane axis 8-aligned
    tb = min(cap, _round_up(-(-batch // n_splits), 8))  # every split gets >=1 tile
    tiles_per_split = -(-batch // (n_splits * tb))
    padded_batch = n_splits * tiles_per_split * tb
    return n_splits, tb, tiles_per_split, padded_batch


def _soft_loss_kernel(w_ref, stu_ref, t1_ref, t2_ref, sp_acc_ref, kl_acc_ref,
                      *, inv_temperature):
    tile = pl.program_id(1)           # "arbitrary" batch-tile reduction axis

    @pl.when(tile == 0)
    def _init():
        sp_acc_ref[...] = jnp.zeros_like(sp_acc_ref)
        kl_acc_ref[...] = jnp.zeros_like(kl_acc_ref)

    w = w_ref[0, 0]
    stu = stu_ref[...].astype(jnp.float32)      # upcast in-kernel (bf16 in HBM)
    tea = (w * t1_ref[...].astype(jnp.float32)
           + (1.0 - w) * t2_ref[...].astype(jnp.float32))
    tb, n = tea.shape
    g = tb // 8                                  # tb is a multiple of 8

    # ---- SigmoidLoss on fused teacher scores (single softplus pass) -------
    # -logsigmoid(x) == softplus(-x); column 0 (positive) gets its sign
    # flipped via a (1, n) lane vector instead of a (tb, n) select.
    col = lax.broadcasted_iota(jnp.int32, (1, n), 1)
    sign = jnp.where(col == 0, jnp.float32(-1.0), jnp.float32(1.0))
    z = tea * sign
    sp = jnp.maximum(z, 0.0) + jnp.log1p(jnp.exp(-jnp.abs(z)))   # stable softplus
    # fold rows into an (8, n) vreg-shaped partial (pure VALU adds, no XLU):
    sp8 = jnp.sum(sp.reshape(g, 8, n), axis=0)

    # ---- KL( softmax(tea/T) || softmax(stu/T) ), algebraic form -----------
    #   kl_row = sum_j p_t * (t_j - s_j) + (lse(s) - lse(t))   [sum_j p_t = 1]
    s = stu * inv_temperature
    t = tea * inv_temperature
    s_max = jnp.max(s, axis=1, keepdims=True)
    t_max = jnp.max(t, axis=1, keepdims=True)
    zs = jnp.sum(jnp.exp(s - s_max), axis=1, keepdims=True)
    et = jnp.exp(t - t_max)
    zt = jnp.sum(et, axis=1, keepdims=True)
    p_t = et * (1.0 / zt)                        # exact reciprocal (zt is (tb,1))
    kl8 = jnp.sum((p_t * (t - s)).reshape(g, 8, n), axis=0)          # (8, n)
    row_scalar = (s_max + jnp.log(zs)) - (t_max + jnp.log(zt))       # (tb, 1)
    rs8 = jnp.sum(row_scalar.reshape(g, 8, 1), axis=0)               # (8, 1)

    # ---- accumulate lane/sublane-dense partials; final reduce is in JAX ----
    sp_acc_ref[...] += sp8
    kl_acc_ref[...] += kl8 + jnp.where(col == 0, rs8, jnp.float32(0.0))


def _soft_loss_pallas(stu_dis, tea_dis1, tea_dis2, weight,
                      temperature=KL_TEMPERATURE,
                      max_tile_rows=_MAX_TILE_ROWS):
    """Returns (loss, fusion_score_loss) as device scalars (jit-friendly)."""
    assert stu_dis.shape == tea_dis1.shape == tea_dis2.shape
    assert stu_dis.ndim == 2 and stu_dis.shape[1] >= 2
    batch, n = stu_dis.shape

    n_splits, tb, tiles_per_split, padded_batch = _choose_layout(
        batch, n, max_tile_rows)
    n_pad = padded_batch - batch
    if n_pad:
        # Zero rows contribute exactly ln2 per candidate to the softplus sums
        # and exactly 0 to the KL; both are corrected analytically below.
        pad = ((0, n_pad), (0, 0))
        stu_dis = jnp.pad(stu_dis, pad)
        tea_dis1 = jnp.pad(tea_dis1, pad)
        tea_dis2 = jnp.pad(tea_dis2, pad)

    w = jnp.asarray(weight, jnp.float32).reshape(1, 1)

    kernel = functools.partial(_soft_loss_kernel,
                               inv_temperature=float(1.0 / temperature))

    def in_map(split, tile, tps=tiles_per_split):
        return (split * tps + tile, 0)

    def out_map(split, tile):
        return (split, 0, 0)

    itemsize = jnp.dtype(stu_dis.dtype).itemsize
    cost = pl.CostEstimate(
        flops=int(30 * padded_batch * n),
        transcendentals=int(4 * padded_batch * n),   # ~3 exp + log1p per element
        bytes_accessed=int(3 * padded_batch * n * itemsize
                           + 2 * n_splits * 8 * n * 4),
    )

    sp_acc, kl_acc = pl.pallas_call(
        kernel,
        out_shape=(jax.ShapeDtypeStruct((n_splits, 8, n), jnp.float32),
                   jax.ShapeDtypeStruct((n_splits, 8, n), jnp.float32)),
        grid=(n_splits, tiles_per_split),
        in_specs=[
            pl.BlockSpec(memory_space=pltpu.MemorySpace.SMEM),   # weight scalar
            pl.BlockSpec((tb, n), in_map),                       # stu_dis
            pl.BlockSpec((tb, n), in_map),                       # tea_dis1
            pl.BlockSpec((tb, n), in_map),                       # tea_dis2
        ],
        out_specs=(pl.BlockSpec((None, 8, n), out_map),
                   pl.BlockSpec((None, 8, n), out_map)),
        compiler_params=pltpu.CompilerParams(
            dimension_semantics=("parallel", "arbitrary")),
        cost_estimate=cost,
    )(w, stu_dis, tea_dis1, tea_dis2)

    # Tiny epilogue in plain JAX: cross-lane/sublane reduce + normalization.
    sp_lanes = jnp.sum(sp_acc, axis=(0, 1))           # (n,)
    kl_sum = jnp.sum(kl_acc)

    b = jnp.float32(batch)
    temp = jnp.float32(temperature)
    pos_sum = sp_lanes[0] - jnp.float32(n_pad * _LN2)
    neg_sum = jnp.sum(sp_lanes[1:]) - jnp.float32(n_pad * (n - 1) * _LN2)

    fusion = 0.5 * (pos_sum / b + neg_sum / (b * (n - 1)))
    kl = kl_sum / b * (temp * temp)
    loss = kl + 1.0 * fusion
    return loss, fusion


def imitation_dual_teacher_v3(stu_dis, tea_dis1, tea_dis2, prefix='',
                              weight=0.5, temperature=KL_TEMPERATURE,
                              max_tile_rows=_MAX_TILE_ROWS):
    """Pallas implementation of Imitation_DualTeacherv3.forward."""
    loss, fusion = _soft_loss_pallas(stu_dis, tea_dis1, tea_dis2, weight,
                                     temperature=temperature,
                                     max_tile_rows=max_tile_rows)
    # TODO(synk): the original module calls .item() here (blocking D2H sync
    # every step); we return device scalars instead and leave float()
    # conversion to logging code outside the hot path.
    loss_record = {
        'soft_loss' + prefix: loss,
        'fusion_score_loss_record' + prefix: fusion,
    }
    return loss, loss_record


# -------------------- pure-JAX reference (for verification) -----------------
def _reference(stu, t1, t2, weight, temperature):
    stu = stu.astype(jnp.float32)
    tea = weight * t1.astype(jnp.float32) + (1.0 - weight) * t2.astype(jnp.float32)
    b, n = tea.shape
    pos_loss = jnp.mean(jax.nn.softplus(-tea[:, 0]))
    neg_loss = jnp.mean(jax.nn.softplus(tea[:, 1:]))
    fusion = 0.5 * (pos_loss + neg_loss)
    log_p_s = jax.nn.log_softmax(stu / temperature, axis=1)
    log_p_t = jax.nn.log_softmax(tea / temperature, axis=1)
    kl = jnp.sum(jnp.exp(log_p_t) * (log_p_t - log_p_s)) / b * (temperature ** 2)
    return kl + fusion, fusion


if __name__ == "__main__":
    key = jax.random.PRNGKey(0)

    # exact zt reciprocal in the kernel -> f32-tight tolerance.
    tol = dict(rtol=1e-4, atol=1e-4)

    def make(k, b, n, dtype=jnp.bfloat16):
        k1, k2, k3 = jax.random.split(k, 3)
        stu = jax.random.normal(k1, (b, n), jnp.float32).astype(dtype)
        t1 = jax.random.normal(k2, (b, n), jnp.float32).astype(dtype)
        t2 = jax.random.normal(k3, (b, n), jnp.float32).astype(dtype)
        return stu, t1, t2

    k0, k1, k2, k3 = jax.random.split(key, 4)

    # 1) small single-split case (B=8, N=128), bf16 inputs, module wrapper.
    stu, t1, t2 = make(k0, 8, 128)
    loss, record = imitation_dual_teacher_v3(stu, t1, t2, prefix='', weight=0.7)
    loss = jax.block_until_ready(loss)
    ref, ref_fusion = _reference(stu, t1, t2, 0.7, KL_TEMPERATURE)
    assert jnp.allclose(loss, ref, **tol), (loss, ref)
    assert jnp.allclose(record['fusion_score_loss_record'], ref_fusion, **tol)
    assert jnp.allclose(record['soft_loss'], loss)

    # 2) multi-tile + 2-way parallel split (B=64, tile_rows=16), under jit,
    #    with a traced fusion weight.
    stu, t1, t2 = make(k1, 64, 128)
    fast = jax.jit(functools.partial(_soft_loss_pallas,
                                     temperature=KL_TEMPERATURE,
                                     max_tile_rows=16))
    loss2, _ = fast(stu, t1, t2, 0.3)
    loss2 = jax.block_until_ready(loss2)
    ref2, _ = _reference(stu, t1, t2, 0.3, KL_TEMPERATURE)
    assert jnp.allclose(loss2, ref2, **tol), (loss2, ref2)

    # 3) ragged batch exercising zero-padding + analytic epilogue correction
    #    (B=56 -> padded to 64, tile_rows=16).
    stu, t1, t2 = make(k2, 56, 128)
    loss3, fusion3 = _soft_loss_pallas(stu, t1, t2, 0.5, max_tile_rows=16)
    loss3 = jax.block_until_ready(loss3)
    ref3, ref3_fusion = _reference(stu, t1, t2, 0.5, KL_TEMPERATURE)
    assert jnp.allclose(loss3, ref3, **tol), (loss3, ref3)
    assert jnp.allclose(fusion3, ref3_fusion, **tol)

    # 4) ragged batch with default (large) tiles (B=40 -> 2 splits of 24 rows).
    stu, t1, t2 = make(k3, 40, 128)
    loss4, _ = _soft_loss_pallas(stu, t1, t2, 0.25)
    loss4 = jax.block_until_ready(loss4)
    ref4, _ = _reference(stu, t1, t2, 0.25, KL_TEMPERATURE)
    assert jnp.allclose(loss4, ref4, **tol), (loss4, ref4)

    print("KERNEL_OK")
</pallas_src>

<mosaic_0001>
module attributes {stable_mosaic.version = 11 : i64} {
  func.func @_soft_loss_kernel(%arg0: i32, %arg1: i32, %arg2: memref<1x1xf32, #tpu.memory_space<smem>>, %arg3: memref<8x128xbf16, #tpu.memory_space<vmem>>, %arg4: memref<8x128xbf16, #tpu.memory_space<vmem>>, %arg5: memref<8x128xbf16, #tpu.memory_space<vmem>>, %arg6: memref<1x8x128xf32, #tpu.memory_space<vmem>>, %arg7: memref<1x8x128xf32, #tpu.memory_space<vmem>>) attributes {dimension_semantics = [#tpu.dimension_semantics<parallel>, #tpu.dimension_semantics<arbitrary>], iteration_bounds = array<i64: 1, 1>, scalar_prefetch = 0 : i64, scratch_operands = 0 : i64, tpu.core_type = #tpu.core_type<tc>, window_params = [{transform_indices = @transform_0, window_bounds = array<i64: 1, 1>}, {transform_indices = @transform_1, window_bounds = array<i64: 8, 128>}, {transform_indices = @transform_2, window_bounds = array<i64: 8, 128>}, {transform_indices = @transform_3, window_bounds = array<i64: 8, 128>}, {transform_indices = @transform_4, window_bounds = array<i64: 1, 8, 128>}, {transform_indices = @transform_5, window_bounds = array<i64: 1, 8, 128>}]} {
    %c0_i32 = arith.constant 0 : i32
    %0 = arith.cmpi eq, %arg1, %c0_i32 : i32
    %1 = arith.extui %0 : i1 to i32
    %c0_i32_0 = arith.constant 0 : i32
    %2 = arith.cmpi ne, %1, %c0_i32_0 : i32
    scf.if %2 {
      %cst_37 = arith.constant 0.000000e+00 : f32
      %88 = vector.broadcast %cst_37 : f32 to vector<8x128xf32>
      %c0_38 = arith.constant 0 : index
      %c0_39 = arith.constant 0 : index
      %c0_40 = arith.constant 0 : index
      %89 = vector.load %arg6[%c0_38, %c0_39, %c0_40] : memref<1x8x128xf32, #tpu.memory_space<vmem>>, vector<1x8x128xf32>
      %90 = vector.shape_cast %89 : vector<1x8x128xf32> to vector<8x128xf32>
      %91 = vector.shape_cast %88 : vector<8x128xf32> to vector<1x8x128xf32>
      tpu.vector_store %arg6[%c0_38, %c0_39, %c0_40], %91 {strides = array<i32>} : memref<1x8x128xf32, #tpu.memory_space<vmem>>, vector<1x8x128xf32>,
      %cst_41 = arith.constant 0.000000e+00 : f32
      %92 = vector.broadcast %cst_41 : f32 to vector<8x128xf32>
      %c0_42 = arith.constant 0 : index
      %c0_43 = arith.constant 0 : index
      %c0_44 = arith.constant 0 : index
      %93 = vector.load %arg7[%c0_42, %c0_43, %c0_44] : memref<1x8x128xf32, #tpu.memory_space<vmem>>, vector<1x8x128xf32>
      %94 = vector.shape_cast %93 : vector<1x8x128xf32> to vector<8x128xf32>
      %95 = vector.shape_cast %92 : vector<8x128xf32> to vector<1x8x128xf32>
      tpu.vector_store %arg7[%c0_42, %c0_43, %c0_44], %95 {strides = array<i32>} : memref<1x8x128xf32, #tpu.memory_space<vmem>>, vector<1x8x128xf32>,
    } else {
    }
    %c0 = arith.constant 0 : index
    %c0_1 = arith.constant 0 : index
    %3 = memref.load %arg2[%c0, %c0_1] : memref<1x1xf32, #tpu.memory_space<smem>>
    %c0_2 = arith.constant 0 : index
    %c0_3 = arith.constant 0 : index
    %4 = vector.load %arg3[%c0_2, %c0_3] : memref<8x128xbf16, #tpu.memory_space<vmem>>, vector<8x128xbf16>
    %5 = arith.extf %4 : vector<8x128xbf16> to vector<8x128xf32>
    %c0_4 = arith.constant 0 : index
    %c0_5 = arith.constant 0 : index
    %6 = vector.load %arg4[%c0_4, %c0_5] : memref<8x128xbf16, #tpu.memory_space<vmem>>, vector<8x128xbf16>
    %7 = arith.extf %6 : vector<8x128xbf16> to vector<8x128xf32>
    %8 = vector.broadcast %3 : f32 to vector<8x128xf32>
    %9 = arith.mulf %8, %7 : vector<8x128xf32>
    %cst = arith.constant 1.000000e+00 : f32
    %10 = arith.subf %cst, %3 : f32
    %c0_6 = arith.constant 0 : index
    %c0_7 = arith.constant 0 : index
    %11 = vector.load %arg5[%c0_6, %c0_7] : memref<8x128xbf16, #tpu.memory_space<vmem>>, vector<8x128xbf16>
    %12 = arith.extf %11 : vector<8x128xbf16> to vector<8x128xf32>
    %13 = vector.broadcast %10 : f32 to vector<8x128xf32>
    %14 = arith.mulf %13, %12 : vector<8x128xf32>
    %15 = arith.addf %9, %14 : vector<8x128xf32>
    %16 = tpu.iota {dimensions = array<i32: 1>} : vector<1x128xi32>
    %c0_i32_8 = arith.constant 0 : i32
    %17 = vector.broadcast %c0_i32_8 : i32 to vector<1x128xi32>
    %18 = arith.cmpi eq, %16, %17 : vector<1x128xi32>
    %cst_9 = arith.constant -1.000000e+00 : f32
    %cst_10 = arith.constant 1.000000e+00 : f32
    %19 = vector.broadcast %cst_9 : f32 to vector<1x128xf32>
    %20 = vector.broadcast %cst_10 : f32 to vector<1x128xf32>
    %21 = arith.select %18, %19, %20 : vector<1x128xi1>, vector<1x128xf32>
    %22 = vector.broadcast %21 : vector<1x128xf32> to vector<8x128xf32>
    %23 = arith.mulf %15, %22 : vector<8x128xf32>
    %cst_11 = arith.constant 0.000000e+00 : f32
    %24 = vector.broadcast %cst_11 : f32 to vector<8x128xf32>
    %25 = arith.maximumf %23, %24 : vector<8x128xf32>
    %26 = math.absf %23 : vector<8x128xf32>
    %cst_12 = arith.constant 0.000000e+00 : f32
    %27 = vector.broadcast %cst_12 : f32 to vector<8x128xf32>
    %28 = arith.subf %27, %26 : vector<8x128xf32>
    %29 = math.exp %28 : vector<8x128xf32>
    %30 = math.log1p %29 : vector<8x128xf32>
    %31 = arith.addf %25, %30 : vector<8x128xf32>
    %32 = vector.shape_cast %31 : vector<8x128xf32> to vector<1x8x128xf32>
    %cst_13 = arith.constant dense<0.000000e+00> : vector<8x128xf32>
    %33 = vector.multi_reduction <add>, %32, %cst_13 [0] : vector<1x8x128xf32> to vector<8x128xf32>
    %cst_14 = arith.constant 5.000000e-01 : f32
    %34 = vector.broadcast %cst_14 : f32 to vector<8x128xf32>
    %35 = arith.mulf %5, %34 : vector<8x128xf32>
    %cst_15 = arith.constant 5.000000e-01 : f32
    %36 = vector.broadcast %cst_15 : f32 to vector<8x128xf32>
    %37 = arith.mulf %15, %36 : vector<8x128xf32>
    %cst_16 = arith.constant dense<0xFF800000> : vector<8xf32>
    %38 = vector.multi_reduction <maximumf>, %35, %cst_16 [1] : vector<8x128xf32> to vector<8xf32>
    %39 = vector.shape_cast %38 : vector<8xf32> to vector<8x1xf32>
    %cst_17 = arith.constant dense<0xFF800000> : vector<8xf32>
    %40 = vector.multi_reduction <maximumf>, %37, %cst_17 [1] : vector<8x128xf32> to vector<8xf32>
    %41 = vector.shape_cast %40 : vector<8xf32> to vector<8x1xf32>
    %42 = vector.broadcast %39 : vector<8x1xf32> to vector<8x128xf32>
    %43 = arith.subf %35, %42 : vector<8x128xf32>
    %44 = math.exp %43 : vector<8x128xf32>
    %cst_18 = arith.constant dense<0.000000e+00> : vector<8xf32>
    %45 = vector.multi_reduction <add>, %44, %cst_18 [1] : vector<8x128xf32> to vector<8xf32>
    %46 = vector.shape_cast %45 : vector<8xf32> to vector<8x1xf32>
    %47 = vector.broadcast %41 : vector<8x1xf32> to vector<8x128xf32>
    %48 = arith.subf %37, %47 : vector<8x128xf32>
    %49 = math.exp %48 : vector<8x128xf32>
    %cst_19 = arith.constant dense<0.000000e+00> : vector<8xf32>
    %50 = vector.multi_reduction <add>, %49, %cst_19 [1] : vector<8x128xf32> to vector<8xf32>
    %51 = vector.shape_cast %50 : vector<8xf32> to vector<8x1xf32>
    %cst_20 = arith.constant 1.000000e+00 : f32
    %52 = vector.broadcast %cst_20 : f32 to vector<8x1xf32>
    %53 = arith.divf %52, %51 : vector<8x1xf32>
    %54 = vector.broadcast %53 : vector<8x1xf32> to vector<8x128xf32>
    %55 = arith.mulf %49, %54 : vector<8x128xf32>
    %56 = arith.subf %37, %35 : vector<8x128xf32>
    %57 = arith.mulf %55, %56 : vector<8x128xf32>
    %58 = vector.shape_cast %57 : vector<8x128xf32> to vector<1x8x128xf32>
    %cst_21 = arith.constant dense<0.000000e+00> : vector<8x128xf32>
    %59 = vector.multi_reduction <add>, %58, %cst_21 [0] : vector<1x8x128xf32> to vector<8x128xf32>
    %60 = math.log %46 : vector<8x1xf32>
    %61 = arith.addf %39, %60 : vector<8x1xf32>
    %62 = math.log %51 : vector<8x1xf32>
    %63 = arith.addf %41, %62 : vector<8x1xf32>
    %64 = arith.subf %61, %63 : vector<8x1xf32>
    %65 = vector.shape_cast %64 : vector<8x1xf32> to vector<1x8x1xf32>
    %cst_22 = arith.constant dense<0.000000e+00> : vector<8x1xf32>
    %66 = vector.multi_reduction <add>, %65, %cst_22 [0] : vector<1x8x1xf32> to vector<8x1xf32>
    %c0_23 = arith.constant 0 : index
    %c0_24 = arith.constant 0 : index
    %c0_25 = arith.constant 0 : index
    %67 = vector.load %arg6[%c0_23, %c0_24, %c0_25] : memref<1x8x128xf32, #tpu.memory_space<vmem>>, vector<1x8x128xf32>
    %68 = vector.shape_cast %67 : vector<1x8x128xf32> to vector<8x128xf32>
    %69 = arith.addf %68, %33 : vector<8x128xf32>
    %c0_26 = arith.constant 0 : index
    %c0_27 = arith.constant 0 : index
    %c0_28 = arith.constant 0 : index
    %70 = vector.load %arg6[%c0_26, %c0_27, %c0_28] : memref<1x8x128xf32, #tpu.memory_space<vmem>>, vector<1x8x128xf32>
    %71 = vector.shape_cast %70 : vector<1x8x128xf32> to vector<8x128xf32>
    %72 = vector.shape_cast %69 : vector<8x128xf32> to vector<1x8x128xf32>
    tpu.vector_store %arg6[%c0_26, %c0_27, %c0_28], %72 {strides = array<i32>} : memref<1x8x128xf32, #tpu.memory_space<vmem>>, vector<1x8x128xf32>,
    %c0_29 = arith.constant 0 : index
    %c0_30 = arith.constant 0 : index
    %c0_31 = arith.constant 0 : index
    %73 = vector.load %arg7[%c0_29, %c0_30, %c0_31] : memref<1x8x128xf32, #tpu.memory_space<vmem>>, vector<1x8x128xf32>
    %74 = vector.shape_cast %73 : vector<1x8x128xf32> to vector<8x128xf32>
    %c0_i32_32 = arith.constant 0 : i32
    %75 = vector.broadcast %c0_i32_32 : i32 to vector<1x128xi32>
    %76 = arith.cmpi eq, %16, %75 : vector<1x128xi32>
    %cst_33 = arith.constant 0.000000e+00 : f32
    %77 = vector.shape_cast %76 : vector<1x128xi1> to vector<1x128xi1>
    %78 = vector.broadcast %77 : vector<1x128xi1> to vector<8x128xi1>
    %79 = vector.shape_cast %66 : vector<8x1xf32> to vector<8x1xf32>
    %80 = vector.broadcast %79 : vector<8x1xf32> to vector<8x128xf32>
    %81 = vector.broadcast %cst_33 : f32 to vector<8x128xf32>
    %82 = arith.select %78, %80, %81 : vector<8x128xi1>, vector<8x128xf32>
    %83 = arith.addf %59, %82 : vector<8x128xf32>
    %84 = arith.addf %74, %83 : vector<8x128xf32>
    %c0_34 = arith.constant 0 : index
    %c0_35 = arith.constant 0 : index
    %c0_36 = arith.constant 0 : index
    %85 = vector.load %arg7[%c0_34, %c0_35, %c0_36] : memref<1x8x128xf32, #tpu.memory_space<vmem>>, vector<1x8x128xf32>
    %86 = vector.shape_cast %85 : vector<1x8x128xf32> to vector<8x128xf32>
    %87 = vector.shape_cast %84 : vector<8x128xf32> to vector<1x8x128xf32>
    tpu.vector_store %arg7[%c0_34, %c0_35, %c0_36], %87 {strides = array<i32>} : memref<1x8x128xf32, #tpu.memory_space<vmem>>, vector<1x8x128xf32>,
    return
  }
  func.func @transform_0(%arg0: i32, %arg1: i32) -> (i32, i32) {
    %c0_i32 = arith.constant 0 : i32
    %c0_i32_0 = arith.constant 0 : i32
    %c0_i32_1 = arith.constant 0 : i32
    return %c0_i32, %c0_i32_0 : i32, i32
  }
  func.func @transform_1(%arg0: i32, %arg1: i32) -> (i32, i32) {
    %c1_i32 = arith.constant 1 : i32
    %0 = arith.muli %arg0, %c1_i32 : i32
    %1 = arith.addi %0, %arg1 : i32
    %c0_i32 = arith.constant 0 : i32
    %c0_i32_0 = arith.constant 0 : i32
    return %1, %c0_i32 : i32, i32
  }
  func.func @transform_2(%arg0: i32, %arg1: i32) -> (i32, i32) {
    %c1_i32 = arith.constant 1 : i32
    %0 = arith.muli %arg0, %c1_i32 : i32
    %1 = arith.addi %0, %arg1 : i32
    %c0_i32 = arith.constant 0 : i32
    %c0_i32_0 = arith.constant 0 : i32
    return %1, %c0_i32 : i32, i32
  }
  func.func @transform_3(%arg0: i32, %arg1: i32) -> (i32, i32) {
    %c1_i32 = arith.constant 1 : i32
    %0 = arith.muli %arg0, %c1_i32 : i32
    %1 = arith.addi %0, %arg1 : i32
    %c0_i32 = arith.constant 0 : i32
    %c0_i32_0 = arith.constant 0 : i32
    return %1, %c0_i32 : i32, i32
  }
  func.func @transform_4(%arg0: i32, %arg1: i32) -> (i32, i32, i32) {
    %c0_i32 = arith.constant 0 : i32
    %c0_i32_0 = arith.constant 0 : i32
    %c0_i32_1 = arith.constant 0 : i32
    return %arg0, %c0_i32, %c0_i32_0 : i32, i32, i32
  }
  func.func @transform_5(%arg0: i32, %arg1: i32) -> (i32, i32, i32) {
    %c0_i32 = arith.constant 0 : i32
    %c0_i32_0 = arith.constant 0 : i32
    %c0_i32_1 = arith.constant 0 : i32
    return %arg0, %c0_i32, %c0_i32_0 : i32, i32, i32
  }
}

</mosaic_0001>

<llo_original>
// kernel: tpu_custom_call.1
$region0: #{tpu_custom_call.1}
  #allocation0 [shape = 'u32[]', space=smem, size = 0x4, offset = 0x4, fixed_abs, tag = 'smem constant byte address 0x4 - core index']
  #allocation1 [shape = 'u32[144,128]{1,0:T(1,128)}', space=vmem, size = 0x12000, scoped, tag = 'internal scratch']
  #allocation2 [shape = 'f32[1,1]{1,0:T(1,128)S(6)}', space=smem, size = 0x200, scoped, tag = 'scoped memory for tpu_custom_call.1']
  %s0 = inlined_call_operand.<no memory space> [shape: f32[1,1], index: 0, kind: input, shape index: {}]
  %s1 = inlined_call_operand.hbm [shape: bf16[8,128], index: 1, kind: input, shape index: {}]
  %s2 = inlined_call_operand.vmem [shape: bf16[8,128], index: 2, kind: input, shape index: {}]
  %s3 = inlined_call_operand.vmem [shape: bf16[8,128], index: 3, kind: input, shape index: {}]
  %s4 = inlined_call_operand.hbm [shape: f32[1,8,128], index: 4, kind: output, shape index: {0}]
  %s5 = inlined_call_operand.hbm [shape: f32[1,8,128], index: 5, kind: output, shape index: {1}]
  %6 = xla_tuple %s4, %s5
  %s7 = sld [smem:[#allocation0]]
  $region42: #{tpu_custom_call.1} parent=0
    _
  %s9 = ssub.s32 1, %s7
  %s10 = scalar_select 0, %s9, %s7
  %11 = sst [smem:[#allocation2]] %s0
  $region1: #{tpu_custom_call.1} parent=0
    #allocation3 [shape = 'u8[2048]{0}', space=vmem, size = 0x800, scoped, tag = 'input window, operand 1, single buffered']
    #allocation4 [shape = 's32[1]{0}', space=sflag, size = 0x4, scoped, tag = 'scoped memory for tpu_custom_call.1']
    #allocation5 [shape = 's32[1]{0}', space=sflag, size = 0x4, scoped, tag = 'scoped memory for tpu_custom_call.1']
    #allocation6 [shape = 'u8[4096]{0}', space=vmem, size = 0x1000, scoped, tag = 'output window, operand 0, single buffered']
    #allocation7 [shape = 'u8[4096]{0}', space=vmem, size = 0x1000, scoped, tag = 'output window, operand 1, single buffered']
    #allocation8 [shape = 's32[1]{0}', space=sflag, size = 0x4, scoped, tag = 'scoped memory for tpu_custom_call.1']
    %12 = vsyncpa [#allocation4], 0
    %13 = vsyncpa [#allocation5], 0
    %14 = vsyncpa [#allocation8], 0
    // Predicated region
    $region2: #{tpu_custom_call.1} parent=1 // pred_check
      _
    $region3: #{tpu_custom_call.1} parent=1 // pred_check_branch
      %16 = sbr.rel (0) target = $region5
    $region4: #{tpu_custom_call.1} parent=1 // pred_region
      _
    $region5: #{tpu_custom_call.1} parent=1 // pred_fallthru
      _
    // Predicated region
    $region6: #{tpu_custom_call.1} parent=1 // pred_check
      _
    $region7: #{tpu_custom_call.1} parent=1 // pred_check_branch
      %18 = sbr.rel (0) target = $region9
    $region8: #{tpu_custom_call.1} parent=1 // pred_region
      %s19 = sadd.s32 0, 0
      %s21 = ssub.s32 64, 64
      %22 = vsyncadd [#allocation4], %s21
      %s23 = smul.addr %s19, 64
      %s24 = scalar_lea.hbm %s1, %s23
      %s26 = sshll.u32 [#allocation3], 4
      %s27 = int_to_ptr.vmem [resolvable:$true] %s26
      %29 = dma.hbm_to_vmem [thread:$0]  %s24, 64, %s27, [#allocation4]
    $region9: #{tpu_custom_call.1} parent=1 // pred_fallthru
      _
    // Predicated region
    $region10: #{tpu_custom_call.1} parent=1 // pred_check
      _
    $region11: #{tpu_custom_call.1} parent=1 // pred_check_branch
      %31 = sbr.rel (0) target = $region13
    $region12: #{tpu_custom_call.1} parent=1 // pred_region
      %s32 = sadd.s32 0, 0
      %p33 = scmp.lt.s32.totalorder %s32, 0
      %s34 = scalar_select %p33, %s32, 0
      %s35 = smul.addr %s34, 4
      %s36 = scalar_lea.vmem %s2, %s35
      %s37 = sadd.s32 0, 0
    $region13: #{tpu_custom_call.1} parent=1 // pred_fallthru
      _
    // Predicated region
    $region14: #{tpu_custom_call.1} parent=1 // pred_check
      _
    $region15: #{tpu_custom_call.1} parent=1 // pred_check_branch
      %39 = sbr.rel (0) target = $region17
    $region16: #{tpu_custom_call.1} parent=1 // pred_region
      %s40 = sadd.s32 0, 0
      %p41 = scmp.lt.s32.totalorder %s40, 0
      %s42 = scalar_select %p41, %s40, 0
      %s43 = smul.addr %s42, 4
      %s44 = scalar_lea.vmem %s3, %s43
      %s45 = sadd.s32 0, 0
    $region17: #{tpu_custom_call.1} parent=1 // pred_fallthru
      _
    // Predicated region
    $region18: #{tpu_custom_call.1} parent=1 // pred_check
      _
    $region19: #{tpu_custom_call.1} parent=1 // pred_check_branch
      %47 = sbr.rel (0) target = $region21
    $region20: #{tpu_custom_call.1} parent=1 // pred_region
      %48 = dma.done [#allocation4], 64
    $region21: #{tpu_custom_call.1} parent=1 // pred_fallthru
      _
    %s49 = sadd.s32 0, 0
    %p50 = scmp.lt.s32.totalorder %s49, 0
    %s51 = scalar_select %p50, %s49, 0
    %s52 = smul.addr %s51, 4
    %s53 = scalar_lea.vmem %s2, %s52
    %s54 = sadd.s32 0, 0
    %p55 = scmp.lt.s32.totalorder %s54, 0
    %s56 = scalar_select %p55, %s54, 0
    %s57 = smul.addr %s56, 4
    %s58 = scalar_lea.vmem %s3, %s57
    %s59 = sadd.s32 0, 0
    %s60 = sadd.s32 0, 0
    %p61 = scmp.lt.s32.totalorder %s60, 0
    %s62 = scalar_select %p61, %s60, 0
    %s63 = smul.addr %s62, 4
    %s64 = scalar_lea.vmem %s2, %s63
    %s65 = sadd.s32 0, 0
    %s66 = sadd.s32 0, 0
    %p67 = scmp.lt.s32.totalorder %s66, 0
    %s68 = scalar_select %p67, %s66, 0
    %s69 = smul.addr %s68, 4
    %s70 = scalar_lea.vmem %s3, %s69
    %s71 = sadd.s32 0, 0
    %p72 = scmp.eq.s32.totalorder 0, 0
    // Predicated region
    $region22: #{tpu_custom_call.1} parent=1 // pred_check
      %p73 = pneg %p72
    $region23: #{tpu_custom_call.1} parent=1 // pred_check_branch
      %75 = sbr.rel (%p73) target = $region25
    $region24: #{tpu_custom_call.1} parent=1 // pred_region
      %76 = vst [vmem:[#allocation6] sm:$0xff] 0.0
      %77 = vst [vmem:[#allocation7] sm:$0xff] 0.0
    $region25: #{tpu_custom_call.1} parent=1 // pred_fallthru
      _
    %s78 = sld [smem:[#allocation2]]
    %v79 = vld [vmem:[#allocation3] sm:$0xf]
    %v80 = vunpack.c.l.bf16 %v79
    %v81 = vld [vmem:[%s64] sm:$0xf]
    %v82 = vunpack.c.l.bf16 %v81
    %v83 = vstv %s78
    %v84 = vmul.f32 %v83, %v82
    %s85 = ssub.f32 1.0, %s78
    %v86 = vld [vmem:[%s70] sm:$0xf]
    %v87 = vunpack.c.l.bf16 %v86
    %v88 = vstv %s85
    %v89 = vmul.f32 %v88, %v87
    %v90 = vadd.f32 %v84, %v89
    %v91 = vlaneseq
    %v92 = vand.u32 %v91, 127
    %vm93 = vcmp.eq.s32.totalorder %v92, 0
    %v94 = vsel %vm93, -1.0, 1.0
    %v95 = vmul.f32 %v90, %v94
    %v96 = vmax.f32 %v95, 0.0
    %v97 = vand.u32 2147483647, %v95
    %v98 = vsub.f32 0.0, %v97
    %v99 = vmul.f32 %v98, 1.442695
    %v100 = vpow.pop %v99
    %v101 = vadd.f32 %v100, 1.0
    %v102 = vlog2.pop %v101
    %v103 = vmul.f32 %v102, 0.6931472
    %v104 = vmul.f32 -0.5, %v100
    %v105 = vadd.f32 %v104, 1.0
    %v106 = vmul.f32 %v105, %v100
    %v107 = vand.u32 2147483647, %v100
    %vm108 = vcmp.lt.f32.partialorder %v107, 0.0004427343
    %v109 = vsel %vm108, %v106, %v103
    %v110 = vadd.f32 %v96, %v109
    %v111 = vadd.f32 %v110, 0.0
    %v112 = vmul.f32 %v80, 0.5
    %v113 = vmul.f32 %v90, 0.5
    %114 = vmax.xlane.f32.xlu0 %v112
    %v115 = vpop.xlane.xlu0 %114
    %116 = vmax.xlane.f32.xlu0 %v113
    %v117 = vpop.xlane.xlu0 %116
    %v118 = vsub.f32 %v112, %v115
    %v119 = vmul.f32 %v118, 1.442695
    %v120 = vpow.pop %v119
    %121 = vadd.xlane.f32.xlu0 %v120
    %v122 = vpop.xlane.xlu0 %121
    %v123 = vsub.f32 %v113, %v117
    %v124 = vmul.f32 %v123, 1.442695
    %v125 = vpow.pop %v124
    %126 = vadd.xlane.f32.xlu0 %v125
    %v127 = vpop.xlane.xlu0 %126
    %v128 = vrcp.pop %v127
    %v129 = vmul.f32 1.0, %v128
    %v130 = vmul.f32 %v125, %v129
    %v131 = vsub.f32 %v113, %v112
    %v132 = vmul.f32 %v130, %v131
    %v133 = vadd.f32 %v132, 0.0
    %v134 = vlog2.pop %v122
    %v135 = vmul.f32 %v134, 0.6931472
    %v136 = vadd.f32 %v115, %v135
    %v137 = vlog2.pop %v127
    %v138 = vmul.f32 %v137, 0.6931472
    %v139 = vadd.f32 %v117, %v138
    %v140 = vsub.f32 %v136, %v139
    %v141 = vadd.f32 %v140, 0.0
    %v142 = vld [vmem:[#allocation6] sm:$0xff]
    %v143 = vadd.f32 %v142, %v111
    %144 = vst [vmem:[#allocation6] sm:$0xff] %v143
    %v145 = vld [vmem:[#allocation7] sm:$0xff]
    %v146 = vsel %vm93, 1, 0
    %vm147 = vcmp.eq.s32.totalorder %v146, 1
    %v148 = vsel %vm147, %v141, 0.0
    %v149 = vadd.f32 %v133, %v148
    %v150 = vadd.f32 %v145, %v149
    %151 = vst [vmem:[#allocation7] sm:$0xff] %v150
    // Predicated region
    $region26: #{tpu_custom_call.1} parent=1 // pred_check
      _
    $region27: #{tpu_custom_call.1} parent=1 // pred_check_branch
      %153 = sbr.rel (0) target = $region29
    $region28: #{tpu_custom_call.1} parent=1 // pred_region
      %s155 = ssub.s32 128, 128
      %156 = vsyncadd [#allocation5], %s155
      %s158 = sshll.u32 [#allocation6], 4
      %s159 = int_to_ptr.vmem [resolvable:$true] %s158
      %161 = dma.vmem_to_hbm [thread:$0]  %s159, 128, %s4, [#allocation5]
    $region29: #{tpu_custom_call.1} parent=1 // pred_fallthru
      _
    // Predicated region
    $region30: #{tpu_custom_call.1} parent=1 // pred_check
      _
    $region31: #{tpu_custom_call.1} parent=1 // pred_check_branch
      %163 = sbr.rel (0) target = $region33
    $region32: #{tpu_custom_call.1} parent=1 // pred_region
      %s165 = ssub.s32 128, 128
      %166 = vsyncadd [#allocation8], %s165
      %s168 = sshll.u32 [#allocation7], 4
      %s169 = int_to_ptr.vmem [resolvable:$true] %s168
      %171 = dma.vmem_to_hbm [thread:$0]  %s169, 128, %s5, [#allocation8]
    $region33: #{tpu_custom_call.1} parent=1 // pred_fallthru
      _
    // Predicated region
    $region34: #{tpu_custom_call.1} parent=1 // pred_check
      _
    $region35: #{tpu_custom_call.1} parent=1 // pred_check_branch
      %173 = sbr.rel (0) target = $region37
    $region36: #{tpu_custom_call.1} parent=1 // pred_region
      %174 = dma.done [#allocation5], 128
    $region37: #{tpu_custom_call.1} parent=1 // pred_fallthru
      _
    // Predicated region
    $region38: #{tpu_custom_call.1} parent=1 // pred_check
      _
    $region39: #{tpu_custom_call.1} parent=1 // pred_check_branch
      %176 = sbr.rel (0) target = $region41
    $region40: #{tpu_custom_call.1} parent=1 // pred_region
      %177 = dma.done [#allocation8], 128
    $region41: #{tpu_custom_call.1} parent=1 // pred_fallthru
      _
    %178 = vsyncpa [#allocation4], 1
    %179 = vsyncpa [#allocation5], 1
    %180 = vsyncpa [#allocation8], 1

</llo_original>
